<compile_context>
chip_gen: v7x
topology: tpu7x:2x2x1
jax: 0.10.0
libtpu: 0.0.40
codegen_flags: <defaults>
</compile_context>

<pallas_src>
import jax
import jax.numpy as jnp
from jax.experimental import pallas as pl
from jax.experimental.pallas import tpu as pltpu

try:
    _TRACER_TYPES = (jax.core.Tracer,)
except Exception:  # pragma: no cover - very new JAX without jax.core.Tracer
    _TRACER_TYPES = ()


# ----------------------------------------------------------------------------
# Shared in-kernel helper: rows (K, C) -> per-channel score (1, C)
# ----------------------------------------------------------------------------
def _score_from_rows(rows, gate_f, *, alpha, n_pos, n_neg, norm, relu,
                     mn=None, mx=None):
    rows = rows.astype(jnp.float32)
    if norm == 'before':
        rows = (rows - mn) / (mx - mn + 1e-12)          # exact div (matches torch)
        if relu:
            rows = jnp.maximum(rows, 0.0)
    elif norm == 'after':
        if relu:
            rows = jnp.maximum(rows, 0.0)
        rows = (rows - mn) / (mx - mn + 1e-12)
    elif relu:
        rows = jnp.maximum(rows, 0.0)

    score = jnp.zeros((1, rows.shape[-1]), jnp.float32)
    if n_pos:
        score = score + alpha * jnp.sum(rows[:n_pos], axis=0, keepdims=True)
    if n_neg:
        score = score - (1.0 - alpha) * gate_f * jnp.sum(rows[n_pos:], axis=0,
                                                         keepdims=True)
    return score


# ----------------------------------------------------------------------------
# FAST PATH: full (BB, HW, C) block per grid step via BlockSpec auto-pipelining
# ----------------------------------------------------------------------------
def _make_fullmap_kernel(*, alpha, n_pos, n_neg, norm, relu, K, BB, HW, C):
    alpha = float(alpha)
    chunk = max(8, min(HW, 32768 // max(C, 1)))   # rows per min/max chunk

    def kernel(idx_ref, gate_ref, act_ref, score_ref):
        step = pl.program_id(0)
        gate_f = gate_ref[0].astype(jnp.float32)
        for bb in range(BB):                       # static unroll, BB small
            b = step * BB + bb
            # K dynamic (1, C) loads from the VMEM-resident block (SMEM scalar
            # index reads -> dynamic sublane slices; no extra HBM traffic).
            rows = jnp.concatenate(
                [act_ref[bb, pl.ds(idx_ref[b, k], 1), :] for k in range(K)],
                axis=0)                            # (K, C)
            mn = mx = None
            if norm != 'null':
                # Per-(b, c) min/max fused into the kernel: chunked sublane
                # reductions over the already-resident block (one HBM pass).
                for s in range(0, HW, chunk):
                    e = min(s + chunk, HW)
                    blk = act_ref[bb, s:e, :]
                    cmn = jnp.min(blk, axis=0, keepdims=True)
                    cmx = jnp.max(blk, axis=0, keepdims=True)
                    mn = cmn if s == 0 else jnp.minimum(mn, cmn)
                    mx = cmx if s == 0 else jnp.maximum(mx, cmx)
                mn = mn.astype(jnp.float32)
                mx = mx.astype(jnp.float32)
                if norm == 'after' and relu:
                    # nearest upsample repeats values and relu is monotone, so
                    # min/max of the relu'd upsampled map == relu of raw min/max.
                    mn = jnp.maximum(mn, 0.0)
                    mx = jnp.maximum(mx, 0.0)
            score_ref[bb] = _score_from_rows(rows, gate_f, alpha=alpha,
                                             n_pos=n_pos, n_neg=n_neg,
                                             norm=norm, relu=relu, mn=mn, mx=mx)

    return kernel


def _scores_fullmap(act_flat, idx, gate, *, alpha, n_pos, n_neg, norm, relu,
                    BB, semantics):
    B, HW, C = act_flat.shape
    K = n_pos + n_neg
    kernel = _make_fullmap_kernel(alpha=alpha, n_pos=n_pos, n_neg=n_neg,
                                  norm=norm, relu=relu, K=K, BB=BB, HW=HW, C=C)
    block_bytes = BB * HW * C * act_flat.dtype.itemsize
    # Explicit, modest scoped-VMEM limit: double-buffered input block plus
    # headroom; far under v7x's 64 MiB physical / 32 MiB default limit.
    vmem_limit = int(min(32 << 20, max(8 << 20, 4 * block_bytes)))

    score = pl.pallas_call(
        kernel,
        out_shape=jax.ShapeDtypeStruct((B, 1, C), jnp.float32),
        grid_spec=pltpu.PrefetchScalarGridSpec(
            num_scalar_prefetch=2,
            grid=(B // BB,),
            in_specs=[pl.BlockSpec((BB, HW, C), lambda i, idx_r, gate_r: (i, 0, 0))],
            out_specs=pl.BlockSpec((BB, 1, C), lambda i, idx_r, gate_r: (i, 0, 0)),
        ),
        compiler_params=pltpu.CompilerParams(
            dimension_semantics=semantics,
            vmem_limit_bytes=vmem_limit),
    )(idx, gate, act_flat)
    return score


# ----------------------------------------------------------------------------
# SLOW PATH: activations stay in HBM; double-buffered manual row gather
# ----------------------------------------------------------------------------
def _make_rowgather_kernel(*, alpha, n_pos, n_neg, norm, relu, K, BB, C):
    alpha = float(alpha)
    KB = BB * K

    def kernel(idx_ref, gate_ref, act_hbm, *rest):
        if norm != 'null':
            mins_ref, maxs_ref, score_ref, buf, sems = rest
        else:
            score_ref, buf, sems = rest

        step = pl.program_id(0)
        nsteps = pl.num_programs(0)
        slot = step % 2

        def start_copies(s, slot_idx):
            # All SMEM index reads happen here, i.e. before any .wait() below
            # (waits break SMEM sst->sld forwarding).
            for bb in range(BB):
                b = s * BB + bb
                for k in range(K):
                    pltpu.make_async_copy(
                        act_hbm.at[b, pl.ds(idx_ref[b, k], 1), :],
                        buf.at[slot_idx, pl.ds(bb * K + k, 1), :],
                        sems.at[slot_idx]).start()

        # Prime the pipeline on the very first step only.
        @pl.when(step == 0)
        def _():
            start_copies(step, slot)

        # Prefetch next step's BB*K rows into the other slot BEFORE waiting on
        # this step's copies (hides HBM round-trips behind compute/writeback).
        @pl.when(step + 1 < nsteps)
        def _():
            start_copies(step + 1, 1 - slot)

        # Wait for this step's copies.  All share one per-slot DMA semaphore;
        # wait with per-copy-sized descriptors whose destinations collectively
        # cover the whole slot (robust and orders later reads after the DMAs).
        for j in range(KB):
            pltpu.make_async_copy(
                act_hbm.at[0, pl.ds(0, 1), :],          # dummy src, same size
                buf.at[slot, pl.ds(j, 1), :],
                sems.at[slot]).wait()

        gate_f = gate_ref[0].astype(jnp.float32)
        all_rows = buf[slot]                            # (BB*K, C) packed rows
        for bb in range(BB):                            # static unroll
            rows = all_rows[bb * K:(bb + 1) * K, :]
            mn = mx = None
            if norm != 'null':
                mn = mins_ref[bb]
                mx = maxs_ref[bb]
            score_ref[bb] = _score_from_rows(rows, gate_f, alpha=alpha,
                                             n_pos=n_pos, n_neg=n_neg,
                                             norm=norm, relu=relu, mn=mn, mx=mx)

    return kernel


def _scores_rowgather(act_flat, idx, gate, *, alpha, n_pos, n_neg, norm, relu,
                      BB, mins=None, maxs=None):
    B, HW, C = act_flat.shape
    K = n_pos + n_neg
    kernel = _make_rowgather_kernel(alpha=alpha, n_pos=n_pos, n_neg=n_neg,
                                    norm=norm, relu=relu, K=K, BB=BB, C=C)

    in_specs = [pl.BlockSpec(memory_space=pl.ANY)]      # activations stay in HBM
    inputs = [act_flat]
    if norm != 'null':
        in_specs += [pl.BlockSpec((BB, 1, C), lambda i, idx_r, gate_r: (i, 0, 0)),
                     pl.BlockSpec((BB, 1, C), lambda i, idx_r, gate_r: (i, 0, 0))]
        inputs += [mins, maxs]

    score = pl.pallas_call(
        kernel,
        out_shape=jax.ShapeDtypeStruct((B, 1, C), jnp.float32),
        grid_spec=pltpu.PrefetchScalarGridSpec(
            num_scalar_prefetch=2,
            grid=(B // BB,),
            in_specs=in_specs,
            out_specs=pl.BlockSpec((BB, 1, C), lambda i, idx_r, gate_r: (i, 0, 0)),
            scratch_shapes=[pltpu.VMEM((2, BB * K, C), act_flat.dtype),
                            pltpu.SemaphoreType.DMA((2,))],
        ),
        # Cross-step prefetch carries state between grid iterations, so the
        # batch axis must execute sequentially on one core.
        compiler_params=pltpu.CompilerParams(dimension_semantics=("arbitrary",)),
    )(idx, gate, *inputs)
    return score


# ----------------------------------------------------------------------------
# Glue
# ----------------------------------------------------------------------------
def _batch_dim_semantics():
    """Semantics for the independent batch grid axis.

    On v7x only CORE_PARALLEL actually splits the grid across the 2 TCs;
    plain parallel/arbitrary barely changes codegen.  Fall back to "parallel"
    on single-TC chips (v5e/v6e) or if detection fails."""
    kind = ""
    try:
        kind = jax.devices()[0].device_kind.lower()
    except Exception:
        pass
    core_parallel = getattr(pltpu, "CORE_PARALLEL", None)
    if core_parallel is not None and "v7" in kind:
        return (core_parallel,), 2
    return ("parallel",), 1


def _pick_bb(B, per_batch_bytes, *, budget, cap=8, min_steps=1):
    best = 1
    for cand in range(1, min(B, cap) + 1):
        if B % cand:
            continue
        if per_batch_bytes * cand > budget:
            continue
        if (B // cand) < min_steps:
            continue
        best = cand
    return best


def compute_channel_scores(act_flat, idx, gate, *, alpha, n_pos, n_neg,
                           norm='null', relu=0, force_gather=False):
    """act_flat: (B, HW, C) channels-last map; idx: (B, K) int32 flat row
    indices (pos rows then neg rows); gate: (1,) int32 neg-path gate.
    Returns (B, C) f32 per-channel scores."""
    B, HW, C = act_flat.shape
    K = n_pos + n_neg
    if K == 0:
        return jnp.zeros((B, C), jnp.float32)

    # Lane alignment: pad channels to a multiple of 128 so gathers/stores are
    # full-lane (no masked partial-lane ops).  No-op when already aligned.
    C_pad = ((C + 127) // 128) * 128
    act_p = act_flat if C_pad == C else jnp.pad(
        act_flat, ((0, 0), (0, 0), (0, C_pad - C)))

    # Clamp flat keypoint indices: an OOB index would otherwise become an
    # out-of-bounds HBM DMA / VMEM load.
    idx = jnp.clip(idx.astype(jnp.int32), 0, HW - 1)
    gate = gate.astype(jnp.int32).reshape(1)

    semantics, n_cores = _batch_dim_semantics()
    per_batch_bytes = HW * C_pad * act_p.dtype.itemsize
    use_fullmap = (not force_gather) and per_batch_bytes <= (2 << 20)

    if use_fullmap:
        min_steps = n_cores if B >= n_cores else 1
        BB = _pick_bb(B, per_batch_bytes, budget=4 << 20, cap=8,
                      min_steps=min_steps)
        score3 = _scores_fullmap(act_p, idx, gate, alpha=alpha, n_pos=n_pos,
                                 n_neg=n_neg, norm=norm, relu=relu, BB=BB,
                                 semantics=semantics)
    else:
        mins = maxs = None
        if norm != 'null':
            # One streaming pass: XLA fuses the sibling min/max reductions into
            # a single multi-output fusion.  (The fast path above fuses them
            # into the kernel itself.)  Nearest upsampling repeats values, so
            # min/max of the (relu'd) upsampled map equals that of the raw map.
            ref_map = act_p
            if norm == 'after' and relu:
                ref_map = jnp.maximum(ref_map, 0.0)
            mins = ref_map.min(axis=1, keepdims=True).astype(jnp.float32)
            maxs = ref_map.max(axis=1, keepdims=True).astype(jnp.float32)
        BB = _pick_bb(B, 1, budget=1 << 30, cap=8, min_steps=1)
        score3 = _scores_rowgather(act_p, idx, gate, alpha=alpha, n_pos=n_pos,
                                   n_neg=n_neg, norm=norm, relu=relu, BB=BB,
                                   mins=mins, maxs=maxs)

    return score3.reshape(B, C_pad)[:, :C]


# ----------------------------------------------------------------------------
# Synthetic, deterministic stand-ins for the external backbone hooks
# (constructor args `fun_extract` / `fun_masked` of TTActivation).
# ----------------------------------------------------------------------------
def make_feature_extractor(key, in_ch, feat_ch, pool):
    """Stand-in for fun_extract(model, x): avg-pool + 1x1 conv + relu.
    Emits channels-last (B, H, W, C) directly (no later transpose pass)."""
    w = jax.random.normal(key, (in_ch, feat_ch), jnp.float32) * 0.1

    def fun_extract(x):                           # x: (B, Cin, Hi, Wi)
        B, Cin, Hi, Wi = x.shape
        xp = x.reshape(B, Cin, Hi // pool, pool, Wi // pool, pool).mean(axis=(3, 5))
        feat = jnp.einsum('bchw,cd->bhwd', xp, w)  # channels-last output
        return jax.nn.relu(feat)

    return fun_extract


def make_masked_head(key, feat_ch, num_classes):
    """Stand-in for fun_masked(model, masks, activations): zero the listed
    channels, global-average-pool, linear classifier (channels-last)."""
    wh = jax.random.normal(key, (feat_ch, num_classes), jnp.float32) * 0.1

    def fun_masked(feature_masks_reshaped, activations):
        mask_idx = feature_masks_reshaped[:, :, 0, 0]                    # (B, K)
        hit = jax.nn.one_hot(mask_idx, activations.shape[-1],
                             dtype=jnp.float32).sum(axis=1)              # (B, C)
        keep = jnp.where(hit > 0, 0.0, 1.0)
        masked = activations * keep[:, None, None, :]
        pooled = masked.mean(axis=(1, 2))
        return pooled @ wh

    return fun_masked


# ----------------------------------------------------------------------------
# TTActivation port (adapt=True path)
# ----------------------------------------------------------------------------
class TTActivationPallas:
    def __init__(self, num_classes, hparams, fun_extract, fun_masked,
                 mode_up='nearest', norm='null', relu=0, img_size=224):
        self.mode_up = mode_up
        self.norm = norm
        self.relu = relu
        self.img_size = img_size
        self.hparams = hparams
        self.num_classes = num_classes
        self.seed = 1111
        self.sorted_channels = []
        self.fun_extract = fun_extract
        self.fun_masked = fun_masked
        # TODO(synk): mode_up='bilinear' (UpsamplingBilinear2d to 224x224) not
        # ported; the default mode_up='nearest' path is implemented exactly.

    def select_features(self, activations, pos_keypoints=None, keypoints=None):
        # activations: channels-last (B, H, W, C); (B, H*W, C) is a free reshape.
        B, H, W, C = activations.shape
        sf = self.img_size // H
        act_flat = activations.reshape(B, H * W, C)

        amt_pos = int(self.hparams['amt_pos'])
        amt_neg = int(self.hparams['amt_neg'])
        use_pos = amt_pos if (amt_pos > 0 and pos_keypoints is not None) else 0
        use_neg = amt_neg if (amt_neg > 0 and keypoints is not None) else 0

        if use_pos + use_neg == 0:
            score = jnp.zeros((B, C), jnp.float32)
        else:
            idx_parts = []
            if use_pos:
                idx_parts.append(((pos_keypoints[..., 0] // sf) * W
                                  + (pos_keypoints[..., 1] // sf)).astype(jnp.int32))
            if use_neg:
                idx_parts.append(((keypoints[..., 0] // sf) * W
                                  + (keypoints[..., 1] // sf)).astype(jnp.int32))
            idx = jnp.concatenate(idx_parts, axis=1)

            # On-device gate replicating "neg_coords.sum() > 0" (no host sync).
            if use_neg:
                gate = (jnp.sum(keypoints) > 0).astype(jnp.int32).reshape(1)
            else:
                gate = jnp.ones((1,), jnp.int32)

            score = compute_channel_scores(
                act_flat, idx, gate,
                alpha=self.hparams['alpha'], n_pos=use_pos, n_neg=use_neg,
                norm=self.norm, relu=self.relu)

        sort = jnp.argsort(score, axis=-1)   # ascending, matches torch.argsort
        if not isinstance(sort, _TRACER_TYPES):
            # Python-side log like the PyTorch module; skipped under tracing.
            self.sorted_channels.append(sort)
        keep = int((1.0 - self.hparams['perc_feature_mask']) * C)
        return sort[:, :keep]

    def forward(self, x, pos_keypoints, keypoints, adapt=False):
        if adapt:
            activations = self.fun_extract(x)                    # (B, H, W, C)
            feature_masks = self.select_features(activations, pos_keypoints, keypoints)
            B, K = feature_masks.shape
            H, W = activations.shape[1], activations.shape[2]
            feature_masks_reshaped = jnp.broadcast_to(
                feature_masks[:, :, None, None], (B, K, H, W))
            outputs = self.fun_masked(feature_masks_reshaped, activations)
        else:
            # TODO(synk): adapt=False path calls the full backbone (self.model(x));
            # no synthetic backbone is provided here.
            raise NotImplementedError("only adapt=True path is implemented")
        return outputs, feature_masks


if __name__ == "__main__":
    key = jax.random.PRNGKey(0)
    k1, k2, k3, k4, k5 = jax.random.split(key, 5)

    B, Cin, IMG = 2, 3, 32
    FEAT_C, POOL = 128, 4          # activations: (2, 8, 8, 128); scale_factor = 4
    num_classes = 5
    hparams = dict(alpha=0.7, amt_pos=4, amt_neg=4, perc_feature_mask=0.5)

    x = jax.random.normal(k1, (B, Cin, IMG, IMG), jnp.float32)
    pos_keypoints = jax.random.randint(k2, (B, hparams['amt_pos'], 2), 0, IMG, jnp.int32)
    keypoints = jax.random.randint(k3, (B, hparams['amt_neg'], 2), 0, IMG, jnp.int32)

    fun_extract = make_feature_extractor(k4, Cin, FEAT_C, POOL)
    fun_masked = make_masked_head(k5, FEAT_C, num_classes)

    tta = TTActivationPallas(num_classes, hparams, fun_extract, fun_masked,
                             mode_up='nearest', norm='null', relu=0, img_size=IMG)

    outputs, feature_masks = tta.forward(x, pos_keypoints, keypoints, adapt=True)
    jax.block_until_ready(outputs)
    jax.block_until_ready(feature_masks)

    assert outputs.shape == (B, num_classes)
    assert feature_masks.shape == (B, int((1.0 - hparams['perc_feature_mask']) * FEAT_C))

    # ------------------------------------------------------------------
    # Pure-JAX reference check of the Pallas score path, covering BOTH
    # kernel paths (fast full-map and manual row-gather) and all norm modes.
    # ------------------------------------------------------------------
    act = fun_extract(x)
    Hh, Ww = act.shape[1], act.shape[2]
    sf = IMG // Hh
    flat = act.reshape(B, Hh * Ww, FEAT_C)
    pidx = ((pos_keypoints[..., 0] // sf) * Ww + (pos_keypoints[..., 1] // sf)).astype(jnp.int32)
    nidx = ((keypoints[..., 0] // sf) * Ww + (keypoints[..., 1] // sf)).astype(jnp.int32)
    idx_all = jnp.concatenate([pidx, nidx], axis=1)
    gate_i = (jnp.sum(keypoints) > 0).astype(jnp.int32).reshape(1)
    gather = jax.vmap(lambda m, i: m[i])                  # (HW,C),(K,) -> (K,C)

    def ref_scores(norm, relu):
        m = flat.astype(jnp.float32)
        if norm == 'before':
            mn = m.min(axis=1, keepdims=True)
            mx = m.max(axis=1, keepdims=True)
            m = (m - mn) / (mx - mn + 1e-12)
            if relu:
                m = jnp.maximum(m, 0.0)
        elif norm == 'after':
            if relu:
                m = jnp.maximum(m, 0.0)
            mn = m.min(axis=1, keepdims=True)
            mx = m.max(axis=1, keepdims=True)
            m = (m - mn) / (mx - mn + 1e-12)
        elif relu:
            m = jnp.maximum(m, 0.0)
        pos_sum = gather(m, pidx).sum(axis=1)
        neg_sum = gather(m, nidx).sum(axis=1)
        g = (jnp.sum(keypoints) > 0).astype(jnp.float32)
        return hparams['alpha'] * pos_sum - (1.0 - hparams['alpha']) * g * neg_sum

    for norm_mode, relu_flag in [('null', 0), ('before', 1), ('after', 1)]:
        ref = ref_scores(norm_mode, relu_flag)
        for force in (False, True):   # False = full-map fast path, True = row-gather path
            got = compute_channel_scores(
                flat, idx_all, gate_i,
                alpha=hparams['alpha'], n_pos=hparams['amt_pos'],
                n_neg=hparams['amt_neg'], norm=norm_mode, relu=relu_flag,
                force_gather=force)
            jax.block_until_ready(got)
            assert jnp.allclose(got, ref, rtol=1e-5, atol=1e-5), \
                f"Pallas score mismatch (norm={norm_mode}, relu={relu_flag}, force_gather={force})"

    print("KERNEL_OK")
</pallas_src>

<mosaic_0001>
module attributes {stable_mosaic.version = 11 : i64} {
  func.func @kernel(%arg0: i32, %arg1: memref<2x8xi32, #tpu.memory_space<smem>>, %arg2: memref<1xi32, #tpu.memory_space<smem>>, %arg3: memref<2x64x128xf32, #tpu.memory_space<vmem>>, %arg4: memref<2x1x128xf32, #tpu.memory_space<vmem>>) attributes {dimension_semantics = [#tpu.dimension_semantics<parallel>], iteration_bounds = array<i64: 1>, scalar_prefetch = 2 : i64, scratch_operands = 0 : i64, tpu.core_type = #tpu.core_type<tc>, window_params = [{transform_indices = @transform_0, window_bounds = array<i64: 2, 64, 128>}, {transform_indices = @transform_1, window_bounds = array<i64: 2, 1, 128>}]} {
    %c0 = arith.constant 0 : index
    %0 = memref.load %arg2[%c0] : memref<1xi32, #tpu.memory_space<smem>>
    %1 = arith.sitofp %0 : i32 to f32
    %c2_i32 = arith.constant 2 : i32
    %2 = arith.muli %arg0, %c2_i32 : i32
    %c0_i32 = arith.constant 0 : i32
    %3 = arith.addi %2, %c0_i32 : i32
    %4 = arith.index_cast %3 : i32 to index
    %c0_0 = arith.constant 0 : index
    %5 = memref.load %arg1[%4, %c0_0] : memref<2x8xi32, #tpu.memory_space<smem>>
    %c0_1 = arith.constant 0 : index
    %6 = arith.index_cast %5 : i32 to index
    %c0_2 = arith.constant 0 : index
    %7 = vector.load %arg3[%c0_1, %6, %c0_2] : memref<2x64x128xf32, #tpu.memory_space<vmem>>, vector<1x1x128xf32>
    %8 = vector.shape_cast %7 : vector<1x1x128xf32> to vector<1x128xf32>
    %9 = arith.index_cast %3 : i32 to index
    %c1 = arith.constant 1 : index
    %10 = memref.load %arg1[%9, %c1] : memref<2x8xi32, #tpu.memory_space<smem>>
    %c0_3 = arith.constant 0 : index
    %11 = arith.index_cast %10 : i32 to index
    %c0_4 = arith.constant 0 : index
    %12 = vector.load %arg3[%c0_3, %11, %c0_4] : memref<2x64x128xf32, #tpu.memory_space<vmem>>, vector<1x1x128xf32>
    %13 = vector.shape_cast %12 : vector<1x1x128xf32> to vector<1x128xf32>
    %14 = arith.index_cast %3 : i32 to index
    %c2 = arith.constant 2 : index
    %15 = memref.load %arg1[%14, %c2] : memref<2x8xi32, #tpu.memory_space<smem>>
    %c0_5 = arith.constant 0 : index
    %16 = arith.index_cast %15 : i32 to index
    %c0_6 = arith.constant 0 : index
    %17 = vector.load %arg3[%c0_5, %16, %c0_6] : memref<2x64x128xf32, #tpu.memory_space<vmem>>, vector<1x1x128xf32>
    %18 = vector.shape_cast %17 : vector<1x1x128xf32> to vector<1x128xf32>
    %19 = arith.index_cast %3 : i32 to index
    %c3 = arith.constant 3 : index
    %20 = memref.load %arg1[%19, %c3] : memref<2x8xi32, #tpu.memory_space<smem>>
    %c0_7 = arith.constant 0 : index
    %21 = arith.index_cast %20 : i32 to index
    %c0_8 = arith.constant 0 : index
    %22 = vector.load %arg3[%c0_7, %21, %c0_8] : memref<2x64x128xf32, #tpu.memory_space<vmem>>, vector<1x1x128xf32>
    %23 = vector.shape_cast %22 : vector<1x1x128xf32> to vector<1x128xf32>
    %24 = arith.index_cast %3 : i32 to index
    %c4 = arith.constant 4 : index
    %25 = memref.load %arg1[%24, %c4] : memref<2x8xi32, #tpu.memory_space<smem>>
    %c0_9 = arith.constant 0 : index
    %26 = arith.index_cast %25 : i32 to index
    %c0_10 = arith.constant 0 : index
    %27 = vector.load %arg3[%c0_9, %26, %c0_10] : memref<2x64x128xf32, #tpu.memory_space<vmem>>, vector<1x1x128xf32>
    %28 = vector.shape_cast %27 : vector<1x1x128xf32> to vector<1x128xf32>
    %29 = arith.index_cast %3 : i32 to index
    %c5 = arith.constant 5 : index
    %30 = memref.load %arg1[%29, %c5] : memref<2x8xi32, #tpu.memory_space<smem>>
    %c0_11 = arith.constant 0 : index
    %31 = arith.index_cast %30 : i32 to index
    %c0_12 = arith.constant 0 : index
    %32 = vector.load %arg3[%c0_11, %31, %c0_12] : memref<2x64x128xf32, #tpu.memory_space<vmem>>, vector<1x1x128xf32>
    %33 = vector.shape_cast %32 : vector<1x1x128xf32> to vector<1x128xf32>
    %34 = arith.index_cast %3 : i32 to index
    %c6 = arith.constant 6 : index
    %35 = memref.load %arg1[%34, %c6] : memref<2x8xi32, #tpu.memory_space<smem>>
    %c0_13 = arith.constant 0 : index
    %36 = arith.index_cast %35 : i32 to index
    %c0_14 = arith.constant 0 : index
    %37 = vector.load %arg3[%c0_13, %36, %c0_14] : memref<2x64x128xf32, #tpu.memory_space<vmem>>, vector<1x1x128xf32>
    %38 = vector.shape_cast %37 : vector<1x1x128xf32> to vector<1x128xf32>
    %39 = arith.index_cast %3 : i32 to index
    %c7 = arith.constant 7 : index
    %40 = memref.load %arg1[%39, %c7] : memref<2x8xi32, #tpu.memory_space<smem>>
    %c0_15 = arith.constant 0 : index
    %41 = arith.index_cast %40 : i32 to index
    %c0_16 = arith.constant 0 : index
    %42 = vector.load %arg3[%c0_15, %41, %c0_16] : memref<2x64x128xf32, #tpu.memory_space<vmem>>, vector<1x1x128xf32>
    %43 = vector.shape_cast %42 : vector<1x1x128xf32> to vector<1x128xf32>
    %44 = tpu.concatenate %8, %13, %18, %23, %28, %33, %38, %43 in 0 : vector<1x128xf32>, vector<1x128xf32>, vector<1x128xf32>, vector<1x128xf32>, vector<1x128xf32>, vector<1x128xf32>, vector<1x128xf32>, vector<1x128xf32> -> vector<8x128xf32>
    %cst = arith.constant 0.000000e+00 : f32
    %45 = vector.broadcast %cst : f32 to vector<1x128xf32>
    %46 = vector.extract_strided_slice %44 {offsets = [0, 0], sizes = [4, 128], strides = [1, 1]} : vector<8x128xf32> to vector<4x128xf32>
    %cst_17 = arith.constant dense<0.000000e+00> : vector<128xf32>
    %47 = vector.multi_reduction <add>, %46, %cst_17 [0] : vector<4x128xf32> to vector<128xf32>
    %48 = vector.shape_cast %47 : vector<128xf32> to vector<1x128xf32>
    %cst_18 = arith.constant 0.699999988 : f32
    %49 = vector.broadcast %cst_18 : f32 to vector<1x128xf32>
    %50 = arith.mulf %49, %48 : vector<1x128xf32>
    %51 = arith.addf %45, %50 : vector<1x128xf32>
    %cst_19 = arith.constant 3.000000e-01 : f32
    %52 = arith.mulf %cst_19, %1 : f32
    %53 = vector.extract_strided_slice %44 {offsets = [4, 0], sizes = [4, 128], strides = [1, 1]} : vector<8x128xf32> to vector<4x128xf32>
    %cst_20 = arith.constant dense<0.000000e+00> : vector<128xf32>
    %54 = vector.multi_reduction <add>, %53, %cst_20 [0] : vector<4x128xf32> to vector<128xf32>
    %55 = vector.shape_cast %54 : vector<128xf32> to vector<1x128xf32>
    %56 = vector.broadcast %52 : f32 to vector<1x128xf32>
    %57 = arith.mulf %56, %55 : vector<1x128xf32>
    %58 = arith.subf %51, %57 : vector<1x128xf32>
    %c0_21 = arith.constant 0 : index
    %c0_22 = arith.constant 0 : index
    %c0_23 = arith.constant 0 : index
    %59 = vector.load %arg4[%c0_21, %c0_22, %c0_23] : memref<2x1x128xf32, #tpu.memory_space<vmem>>, vector<1x1x128xf32>
    %60 = vector.shape_cast %59 : vector<1x1x128xf32> to vector<1x128xf32>
    %61 = vector.shape_cast %58 : vector<1x128xf32> to vector<1x1x128xf32>
    tpu.vector_store %arg4[%c0_21, %c0_22, %c0_23], %61 {strides = array<i32>} : memref<2x1x128xf32, #tpu.memory_space<vmem>>, vector<1x1x128xf32>,
    %c2_i32_24 = arith.constant 2 : i32
    %62 = arith.muli %arg0, %c2_i32_24 : i32
    %c1_i32 = arith.constant 1 : i32
    %63 = arith.addi %62, %c1_i32 : i32
    %64 = arith.index_cast %63 : i32 to index
    %c0_25 = arith.constant 0 : index
    %65 = memref.load %arg1[%64, %c0_25] : memref<2x8xi32, #tpu.memory_space<smem>>
    %c1_26 = arith.constant 1 : index
    %66 = arith.index_cast %65 : i32 to index
    %c0_27 = arith.constant 0 : index
    %67 = vector.load %arg3[%c1_26, %66, %c0_27] : memref<2x64x128xf32, #tpu.memory_space<vmem>>, vector<1x1x128xf32>
    %68 = vector.shape_cast %67 : vector<1x1x128xf32> to vector<1x128xf32>
    %69 = arith.index_cast %63 : i32 to index
    %c1_28 = arith.constant 1 : index
    %70 = memref.load %arg1[%69, %c1_28] : memref<2x8xi32, #tpu.memory_space<smem>>
    %c1_29 = arith.constant 1 : index
    %71 = arith.index_cast %70 : i32 to index
    %c0_30 = arith.constant 0 : index
    %72 = vector.load %arg3[%c1_29, %71, %c0_30] : memref<2x64x128xf32, #tpu.memory_space<vmem>>, vector<1x1x128xf32>
    %73 = vector.shape_cast %72 : vector<1x1x128xf32> to vector<1x128xf32>
    %74 = arith.index_cast %63 : i32 to index
    %c2_31 = arith.constant 2 : index
    %75 = memref.load %arg1[%74, %c2_31] : memref<2x8xi32, #tpu.memory_space<smem>>
    %c1_32 = arith.constant 1 : index
    %76 = arith.index_cast %75 : i32 to index
    %c0_33 = arith.constant 0 : index
    %77 = vector.load %arg3[%c1_32, %76, %c0_33] : memref<2x64x128xf32, #tpu.memory_space<vmem>>, vector<1x1x128xf32>
    %78 = vector.shape_cast %77 : vector<1x1x128xf32> to vector<1x128xf32>
    %79 = arith.index_cast %63 : i32 to index
    %c3_34 = arith.constant 3 : index
    %80 = memref.load %arg1[%79, %c3_34] : memref<2x8xi32, #tpu.memory_space<smem>>
    %c1_35 = arith.constant 1 : index
    %81 = arith.index_cast %80 : i32 to index
    %c0_36 = arith.constant 0 : index
    %82 = vector.load %arg3[%c1_35, %81, %c0_36] : memref<2x64x128xf32, #tpu.memory_space<vmem>>, vector<1x1x128xf32>
    %83 = vector.shape_cast %82 : vector<1x1x128xf32> to vector<1x128xf32>
    %84 = arith.index_cast %63 : i32 to index
    %c4_37 = arith.constant 4 : index
    %85 = memref.load %arg1[%84, %c4_37] : memref<2x8xi32, #tpu.memory_space<smem>>
    %c1_38 = arith.constant 1 : index
    %86 = arith.index_cast %85 : i32 to index
    %c0_39 = arith.constant 0 : index
    %87 = vector.load %arg3[%c1_38, %86, %c0_39] : memref<2x64x128xf32, #tpu.memory_space<vmem>>, vector<1x1x128xf32>
    %88 = vector.shape_cast %87 : vector<1x1x128xf32> to vector<1x128xf32>
    %89 = arith.index_cast %63 : i32 to index
    %c5_40 = arith.constant 5 : index
    %90 = memref.load %arg1[%89, %c5_40] : memref<2x8xi32, #tpu.memory_space<smem>>
    %c1_41 = arith.constant 1 : index
    %91 = arith.index_cast %90 : i32 to index
    %c0_42 = arith.constant 0 : index
    %92 = vector.load %arg3[%c1_41, %91, %c0_42] : memref<2x64x128xf32, #tpu.memory_space<vmem>>, vector<1x1x128xf32>
    %93 = vector.shape_cast %92 : vector<1x1x128xf32> to vector<1x128xf32>
    %94 = arith.index_cast %63 : i32 to index
    %c6_43 = arith.constant 6 : index
    %95 = memref.load %arg1[%94, %c6_43] : memref<2x8xi32, #tpu.memory_space<smem>>
    %c1_44 = arith.constant 1 : index
    %96 = arith.index_cast %95 : i32 to index
    %c0_45 = arith.constant 0 : index
    %97 = vector.load %arg3[%c1_44, %96, %c0_45] : memref<2x64x128xf32, #tpu.memory_space<vmem>>, vector<1x1x128xf32>
    %98 = vector.shape_cast %97 : vector<1x1x128xf32> to vector<1x128xf32>
    %99 = arith.index_cast %63 : i32 to index
    %c7_46 = arith.constant 7 : index
    %100 = memref.load %arg1[%99, %c7_46] : memref<2x8xi32, #tpu.memory_space<smem>>
    %c1_47 = arith.constant 1 : index
    %101 = arith.index_cast %100 : i32 to index
    %c0_48 = arith.constant 0 : index
    %102 = vector.load %arg3[%c1_47, %101, %c0_48] : memref<2x64x128xf32, #tpu.memory_space<vmem>>, vector<1x1x128xf32>
    %103 = vector.shape_cast %102 : vector<1x1x128xf32> to vector<1x128xf32>
    %104 = tpu.concatenate %68, %73, %78, %83, %88, %93, %98, %103 in 0 : vector<1x128xf32>, vector<1x128xf32>, vector<1x128xf32>, vector<1x128xf32>, vector<1x128xf32>, vector<1x128xf32>, vector<1x128xf32>, vector<1x128xf32> -> vector<8x128xf32>
    %cst_49 = arith.constant 0.000000e+00 : f32
    %105 = vector.broadcast %cst_49 : f32 to vector<1x128xf32>
    %106 = vector.extract_strided_slice %104 {offsets = [0, 0], sizes = [4, 128], strides = [1, 1]} : vector<8x128xf32> to vector<4x128xf32>
    %cst_50 = arith.constant dense<0.000000e+00> : vector<128xf32>
    %107 = vector.multi_reduction <add>, %106, %cst_50 [0] : vector<4x128xf32> to vector<128xf32>
    %108 = vector.shape_cast %107 : vector<128xf32> to vector<1x128xf32>
    %cst_51 = arith.constant 0.699999988 : f32
    %109 = vector.broadcast %cst_51 : f32 to vector<1x128xf32>
    %110 = arith.mulf %109, %108 : vector<1x128xf32>
    %111 = arith.addf %105, %110 : vector<1x128xf32>
    %cst_52 = arith.constant 3.000000e-01 : f32
    %112 = arith.mulf %cst_52, %1 : f32
    %113 = vector.extract_strided_slice %104 {offsets = [4, 0], sizes = [4, 128], strides = [1, 1]} : vector<8x128xf32> to vector<4x128xf32>
    %cst_53 = arith.constant dense<0.000000e+00> : vector<128xf32>
    %114 = vector.multi_reduction <add>, %113, %cst_53 [0] : vector<4x128xf32> to vector<128xf32>
    %115 = vector.shape_cast %114 : vector<128xf32> to vector<1x128xf32>
    %116 = vector.broadcast %112 : f32 to vector<1x128xf32>
    %117 = arith.mulf %116, %115 : vector<1x128xf32>
    %118 = arith.subf %111, %117 : vector<1x128xf32>
    %c1_54 = arith.constant 1 : index
    %c0_55 = arith.constant 0 : index
    %c0_56 = arith.constant 0 : index
    %119 = vector.load %arg4[%c1_54, %c0_55, %c0_56] : memref<2x1x128xf32, #tpu.memory_space<vmem>>, vector<1x1x128xf32>
    %120 = vector.shape_cast %119 : vector<1x1x128xf32> to vector<1x128xf32>
    %121 = vector.shape_cast %118 : vector<1x128xf32> to vector<1x1x128xf32>
    tpu.vector_store %arg4[%c1_54, %c0_55, %c0_56], %121 {strides = array<i32>} : memref<2x1x128xf32, #tpu.memory_space<vmem>>, vector<1x1x128xf32>,
    return
  }
  func.func @transform_0(%arg0: i32, %arg1: memref<2x8xi32, #tpu.memory_space<smem>>, %arg2: memref<1xi32, #tpu.memory_space<smem>>) -> (i32, i32, i32) {
    %c0_i32 = arith.constant 0 : i32
    %c0_i32_0 = arith.constant 0 : i32
    %c0_i32_1 = arith.constant 0 : i32
    return %arg0, %c0_i32, %c0_i32_0 : i32, i32, i32
  }
  func.func @transform_1(%arg0: i32, %arg1: memref<2x8xi32, #tpu.memory_space<smem>>, %arg2: memref<1xi32, #tpu.memory_space<smem>>) -> (i32, i32, i32) {
    %c0_i32 = arith.constant 0 : i32
    %c0_i32_0 = arith.constant 0 : i32
    %c0_i32_1 = arith.constant 0 : i32
    return %arg0, %c0_i32, %c0_i32_0 : i32, i32, i32
  }
}

</mosaic_0001>

<llo_original>
// kernel: tpu_custom_call.1
$region0: #{tpu_custom_call.1}
  #allocation0 [shape = 'u32[]', space=smem, size = 0x4, offset = 0x4, fixed_abs, tag = 'smem constant byte address 0x4 - core index']
  #allocation1 [shape = 'u32[144,128]{1,0:T(1,128)}', space=vmem, size = 0x12000, scoped, tag = 'internal scratch']
  #allocation2 [shape = 's32[1]{0}', space=sflag, size = 0x4, scoped, tag = 'scoped memory for tpu_custom_call.1']
  #allocation3 [shape = 'u8[1024]{0}', space=smem, size = 0x400, scoped, tag = 'prefetched SMEM operand 0']
  #allocation4 [shape = 's32[1]{0:T(128)S(6)}', space=smem, size = 0x200, scoped, tag = 'prefetched SMEM operand 1']
  %s0 = inlined_call_operand.vmem [shape: s32[2,8], index: 0, kind: input, shape index: {}]
  %s1 = inlined_call_operand.<no memory space> [shape: s32[1], index: 1, kind: input, shape index: {}]
  %s2 = inlined_call_operand.hbm [shape: f32[2,64,128], index: 2, kind: input, shape index: {}]
  %s3 = inlined_call_operand.hbm [shape: f32[2,1,128], index: 3, kind: output, shape index: {}]
  %s4 = sld [smem:[#allocation0]]
  $region18: #{tpu_custom_call.1} parent=0
    _
  %s6 = ssub.s32 1, %s4
  %s7 = scalar_select 0, %s6, %s4
  %s8 = sshll.u32 %s0, 4
  %s9 = int_to_ptr.vmem [resolvable:$true] %s8
  %11 = dma.vmem_to_smem %s9, 32, [#allocation3], [#allocation2]
  %12 = sst [smem:[#allocation4]] %s1
  %13 = dma.done [#allocation2], 32
  %14 = sfence
  $region1: #{tpu_custom_call.1} parent=0
    #allocation5 [shape = 'u8[65536]{0}', space=vmem, size = 0x10000, scoped, tag = 'input window, operand 2, single buffered']
    #allocation6 [shape = 's32[1]{0}', space=sflag, size = 0x4, scoped, tag = 'scoped memory for tpu_custom_call.1']
    #allocation7 [shape = 's32[1]{0}', space=sflag, size = 0x4, scoped, tag = 'scoped memory for tpu_custom_call.1']
    #allocation8 [shape = 'u8[1024]{0}', space=vmem, size = 0x400, scoped, tag = 'output window, operand 0, single buffered']
    %15 = vsyncpa [#allocation6], 0
    %16 = vsyncpa [#allocation7], 0
    // Predicated region
    $region2: #{tpu_custom_call.1} parent=1 // pred_check
      _
    $region3: #{tpu_custom_call.1} parent=1 // pred_check_branch
      %18 = sbr.rel (0) target = $region5
    $region4: #{tpu_custom_call.1} parent=1 // pred_region
      %s20 = ssub.s32 2048, 2048
      %21 = vsyncadd [#allocation6], %s20
      %s22 = sshll.u32 [#allocation5], 4
      %s23 = int_to_ptr.vmem [resolvable:$true] %s22
      %28 = dma.hbm_to_vmem [thread:$0]  %s2, 2048, %s23, [#allocation6], 128, 128, 8
    $region5: #{tpu_custom_call.1} parent=1 // pred_fallthru
      _
    // Predicated region
    $region6: #{tpu_custom_call.1} parent=1 // pred_check
      _
    $region7: #{tpu_custom_call.1} parent=1 // pred_check_branch
      %30 = sbr.rel (0) target = $region9
    $region8: #{tpu_custom_call.1} parent=1 // pred_region
      %31 = dma.done [#allocation6], 2048
    $region9: #{tpu_custom_call.1} parent=1 // pred_fallthru
      _
    %s32 = sld [smem:[#allocation4]]
    %s33 = scvt.s32.f32 %s32
    %s34 = smul.u32 0, 2
    %s35 = smul.u32 %s34, 128
    %s36 = sld [smem:[#allocation3 + %s35]]
    %s37 = scalar_lea.vmem [#allocation5], %s36
    %v38 = vld [vmem:[%s37] sm:$0x1]
    %s39 = sadd.s32 %s35, 1
    %s40 = sld [smem:[#allocation3 + %s39]]
    %s41 = scalar_lea.vmem [#allocation5], %s40
    %v42 = vld [vmem:[%s41] sm:$0x1]
    %s43 = sadd.s32 %s35, 2
    %s44 = sld [smem:[#allocation3 + %s43]]
    %s45 = scalar_lea.vmem [#allocation5], %s44
    %v46 = vld [vmem:[%s45] sm:$0x1]
    %s47 = sadd.s32 %s35, 3
    %s48 = sld [smem:[#allocation3 + %s47]]
    %s49 = scalar_lea.vmem [#allocation5], %s48
    %v50 = vld [vmem:[%s49] sm:$0x1]
    %s51 = sadd.s32 %s35, 4
    %s52 = sld [smem:[#allocation3 + %s51]]
    %s53 = scalar_lea.vmem [#allocation5], %s52
    %v54 = vld [vmem:[%s53] sm:$0x1]
    %s55 = sadd.s32 %s35, 5
    %s56 = sld [smem:[#allocation3 + %s55]]
    %s57 = scalar_lea.vmem [#allocation5], %s56
    %v58 = vld [vmem:[%s57] sm:$0x1]
    %s59 = sadd.s32 %s35, 6
    %s60 = sld [smem:[#allocation3 + %s59]]
    %s61 = scalar_lea.vmem [#allocation5], %s60
    %v62 = vld [vmem:[%s61] sm:$0x1]
    %s63 = sadd.s32 %s35, 7
    %s64 = sld [smem:[#allocation3 + %s63]]
    %s65 = scalar_lea.vmem [#allocation5], %s64
    %v66 = vld [vmem:[%s65] sm:$0x1]
    %v68 = vrot.slane %v42, 7
    %v71 = vrot.slane %v46, 6
    %v74 = vrot.slane %v50, 5
    %v77 = vrot.slane %v54, 4
    %v80 = vrot.slane %v58, 3
    %v83 = vrot.slane %v62, 2
    %v86 = vrot.slane %v66, 1
    %vm88 = vcmask 1040384
    %v89 = vsel %vm88, %v38, %v68
    %vm90 = vcmask 1041408
    %v91 = vsel %vm90, %v89, %v71
    %vm92 = vcmask 1042432
    %v93 = vsel %vm92, %v91, %v74
    %vm94 = vcmask 1043456
    %v95 = vsel %vm94, %v93, %v77
    %vm96 = vcmask 1044480
    %v97 = vsel %vm96, %v95, %v80
    %vm98 = vcmask 1045504
    %v99 = vsel %vm98, %v97, %v83
    %vm100 = vcmask 1046528
    %v101 = vsel %vm100, %v99, %v86
    %v102 = vsel %vm94, %v101, 0.0
    %v103 = vrot.slane %v102, 4
    %v104 = vadd.f32 %v102, %v103
    %v105 = vrot.slane %v104, 2
    %v106 = vadd.f32 %v104, %v105
    %v107 = vrot.slane %v106, 1
    %v108 = vadd.f32 %v106, %v107
    %v109 = vmul.f32 %v108, 0.7
    %v110 = vadd.f32 %v109, 0.0
    %s111 = smul.f32 %s33, 0.3
    %v113 = vrot.slane %v101, 4
    %v115 = vsel %vm94, %v113, 0.0
    %v116 = vrot.slane %v115, 4
    %v117 = vadd.f32 %v115, %v116
    %v118 = vrot.slane %v117, 2
    %v119 = vadd.f32 %v117, %v118
    %v120 = vrot.slane %v119, 1
    %v121 = vadd.f32 %v119, %v120
    %v122 = vstv %s111
    %v123 = vmul.f32 %v122, %v121
    %v124 = vsub.f32 %v110, %v123
    %125 = vst [vmem:[#allocation8] sm:$0x1] %v124
    %s126 = sadd.s32 %s34, 1
    %s127 = smul.u32 %s126, 128
    %s128 = sld [smem:[#allocation3 + %s127]]
    %s129 = sadd.s32 %s128, 64
    %s130 = scalar_lea.vmem [#allocation5], %s129
    %v131 = vld [vmem:[%s130] sm:$0x1]
    %s132 = sadd.s32 %s127, 1
    %s133 = sld [smem:[#allocation3 + %s132]]
    %s134 = sadd.s32 %s133, 64
    %s135 = scalar_lea.vmem [#allocation5], %s134
    %v136 = vld [vmem:[%s135] sm:$0x1]
    %s137 = sadd.s32 %s127, 2
    %s138 = sld [smem:[#allocation3 + %s137]]
    %s139 = sadd.s32 %s138, 64
    %s140 = scalar_lea.vmem [#allocation5], %s139
    %v141 = vld [vmem:[%s140] sm:$0x1]
    %s142 = sadd.s32 %s127, 3
    %s143 = sld [smem:[#allocation3 + %s142]]
    %s144 = sadd.s32 %s143, 64
    %s145 = scalar_lea.vmem [#allocation5], %s144
    %v146 = vld [vmem:[%s145] sm:$0x1]
    %s147 = sadd.s32 %s127, 4
    %s148 = sld [smem:[#allocation3 + %s147]]
    %s149 = sadd.s32 %s148, 64
    %s150 = scalar_lea.vmem [#allocation5], %s149
    %v151 = vld [vmem:[%s150] sm:$0x1]
    %s152 = sadd.s32 %s127, 5
    %s153 = sld [smem:[#allocation3 + %s152]]
    %s154 = sadd.s32 %s153, 64
    %s155 = scalar_lea.vmem [#allocation5], %s154
    %v156 = vld [vmem:[%s155] sm:$0x1]
    %s157 = sadd.s32 %s127, 6
    %s158 = sld [smem:[#allocation3 + %s157]]
    %s159 = sadd.s32 %s158, 64
    %s160 = scalar_lea.vmem [#allocation5], %s159
    %v161 = vld [vmem:[%s160] sm:$0x1]
    %s162 = sadd.s32 %s127, 7
    %s163 = sld [smem:[#allocation3 + %s162]]
    %s164 = sadd.s32 %s163, 64
    %s165 = scalar_lea.vmem [#allocation5], %s164
    %v166 = vld [vmem:[%s165] sm:$0x1]
    %v168 = vrot.slane %v136, 7
    %v171 = vrot.slane %v141, 6
    %v174 = vrot.slane %v146, 5
    %v177 = vrot.slane %v151, 4
    %v180 = vrot.slane %v156, 3
    %v183 = vrot.slane %v161, 2
    %v186 = vrot.slane %v166, 1
    %v188 = vsel %vm88, %v131, %v168
    %v189 = vsel %vm90, %v188, %v171
    %v190 = vsel %vm92, %v189, %v174
    %v191 = vsel %vm94, %v190, %v177
    %v192 = vsel %vm96, %v191, %v180
    %v193 = vsel %vm98, %v192, %v183
    %v194 = vsel %vm100, %v193, %v186
    %v195 = vsel %vm94, %v194, 0.0
    %v196 = vrot.slane %v195, 4
    %v197 = vadd.f32 %v195, %v196
    %v198 = vrot.slane %v197, 2
    %v199 = vadd.f32 %v197, %v198
    %v200 = vrot.slane %v199, 1
    %v201 = vadd.f32 %v199, %v200
    %v202 = vmul.f32 %v201, 0.7
    %v203 = vadd.f32 %v202, 0.0
    %v205 = vrot.slane %v194, 4
    %v207 = vsel %vm94, %v205, 0.0
    %v208 = vrot.slane %v207, 4
    %v209 = vadd.f32 %v207, %v208
    %v210 = vrot.slane %v209, 2
    %v211 = vadd.f32 %v209, %v210
    %v212 = vrot.slane %v211, 1
    %v213 = vadd.f32 %v211, %v212
    %v214 = vmul.f32 %v122, %v213
    %v215 = vsub.f32 %v203, %v214
    %s216 = scalar_lea.vmem [#allocation8], 1
    %217 = vst [vmem:[%s216] sm:$0x1] %v215
    // Predicated region
    $region10: #{tpu_custom_call.1} parent=1 // pred_check
      _
    $region11: #{tpu_custom_call.1} parent=1 // pred_check_branch
      %219 = sbr.rel (0) target = $region13
    $region12: #{tpu_custom_call.1} parent=1 // pred_region
      %s221 = ssub.s32 32, 32
      %222 = vsyncadd [#allocation7], %s221
      %s223 = sshll.u32 [#allocation8], 4
      %s224 = int_to_ptr.vmem [resolvable:$true] %s223
      %229 = dma.vmem_to_hbm [thread:$0]  %s224, 32, %s3, [#allocation7], 16, 16, 1
    $region13: #{tpu_custom_call.1} parent=1 // pred_fallthru
      _
    // Predicated region
    $region14: #{tpu_custom_call.1} parent=1 // pred_check
      _
    $region15: #{tpu_custom_call.1} parent=1 // pred_check_branch
      %231 = sbr.rel (0) target = $region17
    $region16: #{tpu_custom_call.1} parent=1 // pred_region
      %232 = dma.done [#allocation7], 32
    $region17: #{tpu_custom_call.1} parent=1 // pred_fallthru
      _
    %233 = vsyncpa [#allocation6], 1
    %234 = vsyncpa [#allocation7], 1

</llo_original>
